<compile_context>
chip_gen: v7x
topology: tpu7x:2x2x1
jax: 0.10.0
libtpu: 0.0.40
codegen_flags: <defaults>
</compile_context>

<pallas_src>
import numpy as np
import jax
import jax.numpy as jnp
from jax.experimental import pallas as pl
from jax.experimental.pallas import tpu as pltpu

BN_SCALE = 1.0 / np.sqrt(1.0 + 1e-5)   # BatchNorm1d eval with fresh running stats
NT = 8                                 # node-tile rows (output accumulator block)
TT = 128                               # triplet rows per grid block
GEO_IN = 8                             # 3 raw geo features zero-padded to 8 contraction lanes

_VMEM = pl.BlockSpec(memory_space=pltpu.MemorySpace.VMEM)


# ------------------------- Pallas kernels -------------------------

def geo_mlp_kernel(geo_ref, w_ref, b_ref, o_ref):
    # mlp_geo (localdepth=1): Linear(3,h) + BN(eval, scale folded into w/b) + ReLU
    x = jnp.dot(geo_ref[...], w_ref[...], preferred_element_type=jnp.float32) + b_ref[...]
    o_ref[...] = jnp.maximum(x, 0.0).astype(o_ref.dtype)


def node_proj_kernel(nf_ref, w_ref, o_ref):
    # Per-interaction node projection: nf @ [W0_i | W0_j | W0_k]  ->  [Np, 12h]
    # TODO(synk): tile the node axis for very large graphs; whole-array VMEM block here.
    o_ref[...] = jnp.dot(nf_ref[...], w_ref[...], preferred_element_type=jnp.float32)


def spnn_kernel(blk_ref, pre_ref, geo_ref, w0g_ref, b0_ref, w_ref, bR_ref,
                mask_ref, scat_ref, out_ref):
    # One triplet block (TT rows) of one SPNN interaction.
    # blk_ref (SMEM, scalar-prefetch): destination node-tile id per block (sorted, contiguous).
    b = pl.program_id(0)
    prev = blk_ref[jnp.maximum(b - 1, 0)]

    @pl.when(jnp.logical_or(b == 0, blk_ref[b] != prev))
    def _init():
        out_ref[...] = jnp.zeros_like(out_ref)          # new node tile -> reset accumulator

    h = out_ref.shape[1]
    fd = w_ref.shape[0]

    # Fused first layer: gathered node projections + geo @ W0_geo + bias (BN folded), ReLU.
    x = pre_ref[...] + jnp.dot(geo_ref[...], w0g_ref[...],
                               preferred_element_type=jnp.float32) + b0_ref[...]
    x = jnp.maximum(x, 0.0)

    # Remaining layers: block-diagonal fused [4h, 4h] weights -> all 4 branches in one matmul.
    for l in range(fd):                                  # static unroll
        x = jnp.dot(x.astype(w_ref.dtype), w_ref[l],
                    preferred_element_type=jnp.float32) + bR_ref[l]
        x = jnp.maximum(x, 0.0)

    # F.leaky_relu after the trailing ReLU is the identity -> folded away.
    # Branch select: mask*att folded into mask_ref ([TT, 4h]); sum the 4 h-wide branch blocks.
    x = x * mask_ref[...]
    sel = x[:, 0:h] + x[:, h:2 * h] + x[:, 2 * h:3 * h] + x[:, 3 * h:4 * h]

    # Local scatter_add over the NT destination rows of this node tile.
    out_ref[...] += jnp.dot(scat_ref[...], sel.astype(scat_ref.dtype),
                            preferred_element_type=jnp.float32)


def pool_kernel(pool_ref, x_ref, o_ref):
    # global_add_pool (one-hot matmul, bf16 exact for 0/1) + clamp(max=1e6)
    y = jnp.dot(pool_ref[...], x_ref[...], preferred_element_type=jnp.float32)
    o_ref[...] = jnp.minimum(y, 1.0e6)


# ------------------------- pallas_call wrappers -------------------------

def run_geo_mlp(geo_raw, w, b, h):
    Ttot = geo_raw.shape[0]
    return pl.pallas_call(
        geo_mlp_kernel,
        out_shape=jax.ShapeDtypeStruct((Ttot, h), jnp.bfloat16),
        grid=(Ttot // TT,),
        in_specs=[pl.BlockSpec((TT, GEO_IN), lambda i: (i, 0)),
                  pl.BlockSpec((GEO_IN, h), lambda i: (0, 0)),
                  pl.BlockSpec((1, h), lambda i: (0, 0))],
        out_specs=pl.BlockSpec((TT, h), lambda i: (i, 0)),
        compiler_params=pltpu.CompilerParams(dimension_semantics=("parallel",)),
    )(geo_raw, w, b)


def run_node_proj(nf, w_nodes):
    Np, out_dim = nf.shape[0], w_nodes.shape[1]
    return pl.pallas_call(
        node_proj_kernel,
        out_shape=jax.ShapeDtypeStruct((Np, out_dim), jnp.float32),
        in_specs=[_VMEM, _VMEM],
        out_specs=_VMEM,
    )(nf, w_nodes)


def run_spnn(blk_node, pre, geo_enc, w0g, b0, w_bd, b_rest, maskexp, scat, Np_pad, h):
    num_blocks = int(blk_node.shape[0])
    fd = int(w_bd.shape[0])
    flops = 2 * num_blocks * TT * (h * 4 * h + fd * 4 * h * 4 * h + NT * h)
    bytes_accessed = int(pre.size * 4 + geo_enc.size * 2 + maskexp.size * 2
                         + scat.size * 2 + Np_pad * h * 4)
    grid_spec = pltpu.PrefetchScalarGridSpec(
        num_scalar_prefetch=1,
        grid=(num_blocks,),
        in_specs=[
            pl.BlockSpec((TT, 4 * h), lambda b, blk: (b, 0)),          # pre-activation (nodes)
            pl.BlockSpec((TT, h), lambda b, blk: (b, 0)),              # geo encoding
            pl.BlockSpec((h, 4 * h), lambda b, blk: (0, 0)),           # W0 geo block (fused)
            pl.BlockSpec((1, 4 * h), lambda b, blk: (0, 0)),           # fused bias layer 0
            pl.BlockSpec((fd, 4 * h, 4 * h), lambda b, blk: (0, 0, 0)),  # block-diag layers
            pl.BlockSpec((fd, 1, 4 * h), lambda b, blk: (0, 0, 0)),    # fused biases
            pl.BlockSpec((TT, 4 * h), lambda b, blk: (b, 0)),          # branch mask * att
            pl.BlockSpec((None, NT, TT), lambda b, blk: (b, 0, 0)),    # local scatter one-hot
        ],
        out_specs=pl.BlockSpec((NT, h), lambda b, blk: (blk[b], 0)),
    )
    return pl.pallas_call(
        spnn_kernel,
        out_shape=jax.ShapeDtypeStruct((Np_pad, h), jnp.float32),
        grid_spec=grid_spec,
        compiler_params=pltpu.CompilerParams(
            dimension_semantics=("arbitrary",),        # accumulator across triplet blocks
            vmem_limit_bytes=32 * 1024 * 1024),
        cost_estimate=pl.CostEstimate(flops=flops, transcendentals=0,
                                      bytes_accessed=bytes_accessed),
    )(blk_node, pre, geo_enc, w0g, b0, w_bd, b_rest, maskexp, scat)


def run_pool(pool_mat, x):
    Gp, D = pool_mat.shape[0], x.shape[1]
    return pl.pallas_call(
        pool_kernel,
        out_shape=jax.ShapeDtypeStruct((Gp, D), jnp.float32),
        in_specs=[_VMEM, _VMEM],
        out_specs=_VMEM,
    )(pool_mat, x)


# ------------------------- host-side graph glue -------------------------

def triplets_np(edge_index):
    # TODO(synk): PolyGNN's `triplets` helper is not in the provided source; reconstructed
    # as all directed 2-hop paths i->j->k (edge_ij = m, edge_jk = n) with i != k.
    src, dst = np.asarray(edge_index[0]), np.asarray(edge_index[1])
    E = src.shape[0]
    m, n = np.meshgrid(np.arange(E), np.arange(E), indexing="ij")
    m, n = m.ravel(), n.ravel()
    sel = (dst[m] == src[n]) & (src[m] != dst[n])
    m, n = m[sel], n[sel]
    return src[m], dst[m], dst[n], m, n        # i, j, k, edx_ij, edx_jk


def build_blocks(tri_i, tri_j, tri_k, branch, att_np, geo_raw, N, h):
    """Sort triplets by destination node, group by node tile (NT), pad each group to a
    multiple of TT (min 1 block so every node tile is zero-initialized)."""
    n_tiles = max((N + NT - 1) // NT, 1)
    order = np.argsort(tri_i, kind="stable")
    group = tri_i[order] // NT
    counts = np.bincount(group, minlength=n_tiles).astype(np.int64)
    nblocks = np.maximum((counts + TT - 1) // TT, 1)
    num_blocks = int(nblocks.sum())
    Ttot = num_blocks * TT

    blk_node = np.zeros((num_blocks,), np.int32)
    scat = np.zeros((num_blocks, NT, TT), np.float32)
    perm = np.zeros((Ttot,), np.int64)
    valid = np.zeros((Ttot,), bool)

    blk, pos, start = 0, 0, 0
    for t in range(n_tiles):
        cnt = int(counts[t])
        idxs = order[start:start + cnt]
        start += cnt
        for bb in range(int(nblocks[t])):
            blk_node[blk] = t
            seg = idxs[bb * TT:(bb + 1) * TT]
            L = seg.shape[0]
            if L > 0:
                perm[pos:pos + L] = seg
                valid[pos:pos + L] = True
                scat[blk, tri_i[seg] - t * NT, np.arange(L)] = 1.0
            blk += 1
            pos += TT

    ii = np.where(valid, tri_i[perm], 0).astype(np.int32)
    jj = np.where(valid, tri_j[perm], 0).astype(np.int32)
    kk = np.where(valid, tri_k[perm], 0).astype(np.int32)

    mask4 = np.zeros((Ttot, 4), np.float32)
    vi = np.arange(Ttot)[valid]
    vb = branch[perm[valid]]
    mask4[vi, vb] = att_np[vb]                       # att folded into the branch mask
    maskexp = np.repeat(mask4, h, axis=1)            # [Ttot, 4h]

    geo_p = np.zeros((Ttot, GEO_IN), np.float32)
    geo_p[valid] = geo_raw[perm[valid]]
    return blk_node, scat, ii, jj, kk, maskexp, geo_p, n_tiles


# ------------------------- parameters -------------------------

def xavier_uniform(key, fan_in, fan_out):
    a = np.sqrt(6.0 / (fan_in + fan_out))
    return jax.random.uniform(key, (fan_in, fan_out), jnp.float32, -a, a)


def init_params(key, h, num_interactions, finaldepth):
    # BN(eval) scale 1/sqrt(1+eps) folded into weights/biases (fresh running stats).
    p = {"att": jnp.ones((4,), jnp.float32)}
    key, k = jax.random.split(key)
    w_geo = jnp.zeros((GEO_IN, h), jnp.float32).at[:3].set(xavier_uniform(k, 3, h))
    p["w_geo"] = w_geo * BN_SCALE
    p["b_geo"] = jnp.zeros((1, h), jnp.float32)

    p["w0_nodes"], p["w0_geo"], p["b0"], p["w_bd"], p["b_rest"] = [], [], [], [], []
    for _ in range(num_interactions):
        cols = []
        for _ in range(4):                                  # per-branch Linear(4h, h)
            key, k = jax.random.split(key)
            cols.append(xavier_uniform(k, 4 * h, h))
        w0 = jnp.concatenate(cols, axis=1) * BN_SCALE       # fused [4h, 4h]
        p["w0_nodes"].append(jnp.concatenate(
            [w0[0:h], w0[h:2 * h], w0[2 * h:3 * h]], axis=1).astype(jnp.bfloat16))  # [h, 12h]
        p["w0_geo"].append(w0[3 * h:4 * h].astype(jnp.bfloat16))                    # [h, 4h]
        p["b0"].append(jnp.zeros((1, 4 * h), jnp.float32))

        layers = []
        for _ in range(finaldepth):
            blocks = []
            for _ in range(4):                              # per-branch Linear(h, h)
                key, k = jax.random.split(key)
                blocks.append(xavier_uniform(k, h, h))
            layers.append(jax.scipy.linalg.block_diag(*blocks) * BN_SCALE)
        p["w_bd"].append(jnp.stack(layers).astype(jnp.bfloat16))        # [fd, 4h, 4h]
        p["b_rest"].append(jnp.zeros((finaldepth, 1, 4 * h), jnp.float32))
    return p


# ------------------------- full forward -------------------------

def geometry_encoder_forward(node_positions, intra_edges, inter_edges, node_to_feature,
                             params, h, num_interactions):
    # TODO(synk): training-branch spanning-tree construction (torch.rand + python set ops)
    # has no deterministic Pallas equivalent; this implements the eval-mode forward.
    intra, inter = np.asarray(intra_edges), np.asarray(inter_edges)
    combined = np.concatenate([intra, inter], axis=1)
    N = int(np.asarray(node_positions).shape[0])
    num_edge_inside = int(inter.shape[1])

    tri_i, tri_j, tri_k, edx_ij, edx_jk = triplets_np(combined)
    T = int(tri_i.shape[0])
    assert T > 0, "example graph produced no triplets"

    m_ij = edx_ij < num_edge_inside
    m_jk = edx_jk < num_edge_inside
    branch = np.select([m_ij & m_jk, m_ij & ~m_jk, ~m_ij & m_jk],
                       [0, 1, 2], default=3).astype(np.int64)

    coords = np.asarray(node_positions, np.float64)
    ci, cj, ck = coords[tri_i], coords[tri_j], coords[tri_k]
    v1, v2 = cj - ci, ck - cj
    d_ij = np.linalg.norm(v1, axis=1)
    d_jk = np.linalg.norm(cj - ck, axis=1)
    # TODO(synk): get_angle() not provided; 2-D reconstruction atan2(|cross_z|, dot).
    cross = v1[:, 0] * v2[:, 1] - v1[:, 1] * v2[:, 0]
    theta = np.arctan2(np.abs(cross), np.sum(v1 * v2, axis=1))
    geo_raw = np.zeros((T, GEO_IN), np.float32)
    geo_raw[:, 0], geo_raw[:, 1], geo_raw[:, 2] = d_ij, d_jk, theta

    att_np = np.asarray(params["att"], np.float32)
    blk_node, scat, ii, jj, kk, maskexp, geo_p, n_tiles = build_blocks(
        tri_i, tri_j, tri_k, branch, att_np, geo_raw, N, h)
    Np_pad = n_tiles * NT

    blk_node_j = jnp.asarray(blk_node)
    scat_j = jnp.asarray(scat, jnp.bfloat16)
    maskexp_j = jnp.asarray(maskexp, jnp.bfloat16)
    geo_p_j = jnp.asarray(geo_p, jnp.float32)
    ii_j, jj_j, kk_j = jnp.asarray(ii), jnp.asarray(jj), jnp.asarray(kk)

    geo_enc = run_geo_mlp(geo_p_j, params["w_geo"], params["b_geo"], h)    # [Ttot, h] bf16

    node_feature = jnp.zeros((Np_pad, h), jnp.float32)                     # input_feature = zeros
    feats = []
    for it in range(num_interactions):
        # Project node features once (O(N*h*4h) per role) then gather + sum per triplet.
        proj = run_node_proj(node_feature.astype(jnp.bfloat16), params["w0_nodes"][it])
        pre = (proj[ii_j, 0:4 * h] + proj[jj_j, 4 * h:8 * h] + proj[kk_j, 8 * h:12 * h])
        node_feature = run_spnn(blk_node_j, pre, geo_enc,
                                params["w0_geo"][it], params["b0"][it],
                                params["w_bd"][it], params["b_rest"][it],
                                maskexp_j, scat_j, Np_pad, h)              # [Np_pad, h]
        feats.append(node_feature)
    out_all = jnp.concatenate(feats, axis=1)                               # [Np_pad, ni*h]

    node_to_feature = np.asarray(node_to_feature)
    G = int(node_to_feature.max()) + 1
    Gp = max(((G + 7) // 8) * 8, 8)
    pool = np.zeros((Gp, Np_pad), np.float32)
    pool[node_to_feature, np.arange(N)] = 1.0
    emb = run_pool(jnp.asarray(pool, jnp.bfloat16), out_all.astype(jnp.bfloat16))
    return emb[:G]


# ------------------------- example -------------------------

if __name__ == "__main__":
    h_dim, num_interactions, finaldepth = 32, 2, 2

    key = jax.random.PRNGKey(0)
    key, kpos = jax.random.split(key)
    N = 10
    node_positions = np.asarray(jax.random.normal(kpos, (N, 2), jnp.float32))

    # two 5-node rings (intra, bidirectional) + a few inter edges
    def ring(offset, n):
        e = [(offset + a, offset + (a + 1) % n) for a in range(n)]
        return e + [(b, a) for (a, b) in e]
    intra_edges = np.asarray(ring(0, 5) + ring(5, 5), dtype=np.int64).T     # [2, 20]
    inter_edges = np.asarray([(0, 5), (5, 0), (2, 7), (7, 2)], dtype=np.int64).T  # [2, 4]
    node_to_feature = np.asarray([0] * 5 + [1] * 5, dtype=np.int64)         # 2 graphs

    params = init_params(key, h_dim, num_interactions, finaldepth)

    emb = geometry_encoder_forward(node_positions, intra_edges, inter_edges,
                                   node_to_feature, params, h_dim, num_interactions)
    emb = jax.block_until_ready(emb)
    assert emb.shape == (2, num_interactions * h_dim)
    assert bool(jnp.all(jnp.isfinite(emb)))
    print("KERNEL_OK")
</pallas_src>

<mosaic_0001>
module attributes {stable_mosaic.version = 11 : i64} {
  func.func @geo_mlp_kernel(%arg0: i32, %arg1: memref<128x8xf32, #tpu.memory_space<vmem>>, %arg2: memref<8x32xf32, #tpu.memory_space<vmem>>, %arg3: memref<1x32xf32, #tpu.memory_space<vmem>>, %arg4: memref<128x32xbf16, #tpu.memory_space<vmem>>) attributes {dimension_semantics = [#tpu.dimension_semantics<parallel>], iteration_bounds = array<i64: 2>, scalar_prefetch = 0 : i64, scratch_operands = 0 : i64, tpu.core_type = #tpu.core_type<tc>, window_params = [{transform_indices = @transform_0, window_bounds = array<i64: 128, 8>}, {pipeline_mode = #tpu.pipeline_mode<synchronous>, transform_indices = @transform_1, window_bounds = array<i64: 8, 32>}, {pipeline_mode = #tpu.pipeline_mode<synchronous>, transform_indices = @transform_2, window_bounds = array<i64: 1, 32>}, {transform_indices = @transform_3, window_bounds = array<i64: 128, 32>}]} {
    %c0 = arith.constant 0 : index
    %c0_0 = arith.constant 0 : index
    %0 = vector.load %arg1[%c0, %c0_0] : memref<128x8xf32, #tpu.memory_space<vmem>>, vector<128x8xf32>
    %c0_1 = arith.constant 0 : index
    %c0_2 = arith.constant 0 : index
    %1 = vector.load %arg2[%c0_1, %c0_2] : memref<8x32xf32, #tpu.memory_space<vmem>>, vector<8x32xf32>
    %cst = arith.constant dense<0.000000e+00> : vector<128x32xf32>
    %2 = tpu.matmul %0, %1, %cst {dimension_numbers = #tpu.dot_dimension_numbers<[1], [0], [0], [1], [0, 0, 1, 1], [], []>} : vector<128x8xf32>, vector<8x32xf32>, vector<128x32xf32> -> vector<128x32xf32>
    %c0_3 = arith.constant 0 : index
    %c0_4 = arith.constant 0 : index
    %3 = vector.load %arg3[%c0_3, %c0_4] : memref<1x32xf32, #tpu.memory_space<vmem>>, vector<1x32xf32>
    %4 = vector.broadcast %3 : vector<1x32xf32> to vector<128x32xf32>
    %5 = arith.addf %2, %4 : vector<128x32xf32>
    %cst_5 = arith.constant 0.000000e+00 : f32
    %6 = vector.broadcast %cst_5 : f32 to vector<128x32xf32>
    %7 = arith.maximumf %5, %6 : vector<128x32xf32>
    %8 = arith.truncf %7 : vector<128x32xf32> to vector<128x32xbf16>
    %c0_6 = arith.constant 0 : index
    %c0_7 = arith.constant 0 : index
    %9 = vector.load %arg4[%c0_6, %c0_7] : memref<128x32xbf16, #tpu.memory_space<vmem>>, vector<128x32xbf16>
    tpu.vector_store %arg4[%c0_6, %c0_7], %8 {strides = array<i32>} : memref<128x32xbf16, #tpu.memory_space<vmem>>, vector<128x32xbf16>,
    return
  }
  func.func @transform_0(%arg0: i32) -> (i32, i32) {
    %c0_i32 = arith.constant 0 : i32
    %c0_i32_0 = arith.constant 0 : i32
    return %arg0, %c0_i32 : i32, i32
  }
  func.func @transform_1(%arg0: i32) -> (i32, i32) {
    %c0_i32 = arith.constant 0 : i32
    %c0_i32_0 = arith.constant 0 : i32
    %c0_i32_1 = arith.constant 0 : i32
    return %c0_i32, %c0_i32_0 : i32, i32
  }
  func.func @transform_2(%arg0: i32) -> (i32, i32) {
    %c0_i32 = arith.constant 0 : i32
    %c0_i32_0 = arith.constant 0 : i32
    %c0_i32_1 = arith.constant 0 : i32
    return %c0_i32, %c0_i32_0 : i32, i32
  }
  func.func @transform_3(%arg0: i32) -> (i32, i32) {
    %c0_i32 = arith.constant 0 : i32
    %c0_i32_0 = arith.constant 0 : i32
    return %arg0, %c0_i32 : i32, i32
  }
}

</mosaic_0001>

<llo_original>
// kernel: tpu_custom_call.1
$region0: #{tpu_custom_call.1}
  #allocation0 [shape = 'u32[]', space=smem, size = 0x4, offset = 0x4, fixed_abs, tag = 'smem constant byte address 0x4 - core index']
  #allocation1 [shape = 'u32[144,128]{1,0:T(1,128)}', space=vmem, size = 0x12000, scoped, tag = 'internal scratch']
  %s0 = inlined_call_operand.vmem [shape: f32[256,8], index: 0, kind: input, shape index: {}]
  %s1 = inlined_call_operand.vmem [shape: f32[8,32], index: 1, kind: input, shape index: {}]
  %s2 = inlined_call_operand.vmem [shape: f32[1,32], index: 2, kind: input, shape index: {}]
  %s3 = inlined_call_operand.vmem [shape: bf16[256,32], index: 3, kind: output, shape index: {}]
  %s4 = sld [smem:[#allocation0]]
  $region45: #{tpu_custom_call.1} parent=0
    _
  %s6 = ssub.s32 1, %s4
  %s7 = scalar_select 0, %s6, %s4
  loop: start=0, step=1, limit=4
  $region2: #{tpu_custom_call.1} parent=0 // loop_pre_header
    _
  $region3: #{tpu_custom_call.1} parent=0 // loop_header
    %s9 = sphi 0, %s13
    %p10 = scmp.ge.s32.totalorder %s9, 4
    %s19 = sphi 0, %s21
    %s22 = sphi 0, %s19
    %s23 = sphi 0, %s22
    %s39 = sphi 0, %s23
    %s43 = sphi 0, %s43
    %s45 = sphi 0, %s43
    %s46 = sphi 0, %s45
    %s60 = sphi 0, %s46
    %s64 = sphi 0, %s64
    %s66 = sphi 0, %s64
    %s67 = sphi 0, %s66
    %s81 = sphi 0, %s67
    %s87 = sphi 0, %s89
    %s90 = sphi 0, %s87
    %s91 = sphi 0, %s90
    %s107 = sphi 0, %s91
  $region4: #{tpu_custom_call.1} parent=0 // loop_header_branch
    %12 = sbr.rel (%p10) target = $region8
  $region5: #{tpu_custom_call.1} parent=0 // loop_body
    %s14 = ssub.s32 %s9, 1
    %s15 = ssub.s32 %s9, 2
    %s16 = sadd.s32 %s9, 1
    %s17 = ssub.s32 %s9, %s16
    %p18 = scmp.eq.s32.totalorder %s17, 0
    %s20 = sadd.s32 %s19, 1
    %s21 = scalar_select %p18, %s19, %s20
    %p24 = pneg %p18
    %p25 = scmp.eq.s32.totalorder %s9, 1
    %p26 = por %p24, %p25
    %p27 = scmp.ne.s32.totalorder %s19, %s22
    %p28 = scmp.eq.s32.totalorder %s9, 0
    %p29 = por %p27, %p28
    %p30 = scmp.ne.s32.totalorder %s19, %s22
    %p31 = scmp.eq.s32.totalorder %s14, 1
    %p32 = por %p30, %p31
    %p33 = scmp.ne.s32.totalorder %s22, %s23
    %p34 = scmp.eq.s32.totalorder %s14, 0
    %p35 = por %p33, %p34
    %p36 = scmp.ne.s32.totalorder %s22, %s23
    %p37 = scmp.eq.s32.totalorder %s15, 1
    %p38 = por %p36, %p37
    %p40 = scmp.ne.s32.totalorder %s23, %s39
    %p41 = scmp.eq.s32.totalorder %s15, 0
    %p42 = por %p40, %p41
    %s44 = sadd.s32 %s43, 1
    %p47 = scmp.eq.s32.totalorder %s9, 1
    %p48 = scmp.ne.s32.totalorder %s43, %s45
    %p49 = scmp.eq.s32.totalorder %s9, 0
    %p50 = por %p48, %p49
    %p51 = scmp.ne.s32.totalorder %s43, %s45
    %p52 = scmp.eq.s32.totalorder %s14, 1
    %p53 = por %p51, %p52
    %p54 = scmp.ne.s32.totalorder %s45, %s46
    %p55 = scmp.eq.s32.totalorder %s14, 0
    %p56 = por %p54, %p55
    %p57 = scmp.ne.s32.totalorder %s45, %s46
    %p58 = scmp.eq.s32.totalorder %s15, 1
    %p59 = por %p57, %p58
    %p61 = scmp.ne.s32.totalorder %s46, %s60
    %p62 = scmp.eq.s32.totalorder %s15, 0
    %p63 = por %p61, %p62
    %s65 = sadd.s32 %s64, 1
    %p68 = scmp.eq.s32.totalorder %s9, 1
    %p69 = scmp.ne.s32.totalorder %s64, %s66
    %p70 = scmp.eq.s32.totalorder %s9, 0
    %p71 = por %p69, %p70
    %p72 = scmp.ne.s32.totalorder %s64, %s66
    %p73 = scmp.eq.s32.totalorder %s14, 1
    %p74 = por %p72, %p73
    %p75 = scmp.ne.s32.totalorder %s66, %s67
    %p76 = scmp.eq.s32.totalorder %s14, 0
    %p77 = por %p75, %p76
    %p78 = scmp.ne.s32.totalorder %s66, %s67
    %p79 = scmp.eq.s32.totalorder %s15, 1
    %p80 = por %p78, %p79
    %p82 = scmp.ne.s32.totalorder %s67, %s81
    %p83 = scmp.eq.s32.totalorder %s15, 0
    %p84 = por %p82, %p83
    %s85 = ssub.s32 %s9, %s16
    %p86 = scmp.eq.s32.totalorder %s85, 0
    %s88 = sadd.s32 %s87, 1
    %s89 = scalar_select %p86, %s87, %s88
    %p92 = pneg %p86
    %p93 = scmp.eq.s32.totalorder %s9, 1
    %p94 = por %p92, %p93
    %p95 = scmp.ne.s32.totalorder %s87, %s90
    %p96 = scmp.eq.s32.totalorder %s9, 0
    %p97 = por %p95, %p96
    %p98 = scmp.ne.s32.totalorder %s87, %s90
    %p99 = scmp.eq.s32.totalorder %s14, 1
    %p100 = por %p98, %p99
    %p101 = scmp.ne.s32.totalorder %s90, %s91
    %p102 = scmp.eq.s32.totalorder %s14, 0
    %p103 = por %p101, %p102
    %p104 = scmp.ne.s32.totalorder %s90, %s91
    %p105 = scmp.eq.s32.totalorder %s15, 1
    %p106 = por %p104, %p105
    %p108 = scmp.ne.s32.totalorder %s91, %s107
    %p109 = scmp.eq.s32.totalorder %s15, 0
    %p110 = por %p108, %p109
    %p111 = scmp.le.s32.totalorder 1, %s9
    %p112 = scmp.lt.s32.totalorder %s9, 3
    %p113 = pnand %p111, %p112
    %p114 = pneg %p113
    // Predicated region
    $region9: #{tpu_custom_call.1} parent=5 // pred_check
      _
    $region10: #{tpu_custom_call.1} parent=5 // pred_check_branch
      %116 = sbr.rel (%p113) target = $region12
    $region11: #{tpu_custom_call.1} parent=5 // pred_region
      %s117 = ssub.s32 %s9, 1
      // Predicated region
      $region13: #{tpu_custom_call.1} parent=11 // pred_check
        %p118 = pneg %p56
      $region14: #{tpu_custom_call.1} parent=11 // pred_check_branch
        %120 = sbr.rel (%p118) target = $region16
      $region15: #{tpu_custom_call.1} parent=11 // pred_region
        _
      $region16: #{tpu_custom_call.1} parent=11 // pred_fallthru
        _
      // Predicated region
      $region17: #{tpu_custom_call.1} parent=11 // pred_check
        %p121 = pneg %p77
      $region18: #{tpu_custom_call.1} parent=11 // pred_check_branch
        %123 = sbr.rel (%p121) target = $region20
      $region19: #{tpu_custom_call.1} parent=11 // pred_region
        _
      $region20: #{tpu_custom_call.1} parent=11 // pred_fallthru
        _
    $region12: #{tpu_custom_call.1} parent=5 // pred_fallthru
      _
    %p124 = scmp.lt.s32.totalorder %s9, 2
    // Predicated region
    $region21: #{tpu_custom_call.1} parent=5 // pred_check
      %p125 = pneg %p124
    $region22: #{tpu_custom_call.1} parent=5 // pred_check_branch
      %127 = sbr.rel (%p125) target = $region24
    $region23: #{tpu_custom_call.1} parent=5 // pred_region
      // Predicated region
      $region25: #{tpu_custom_call.1} parent=23 // pred_check
        %p128 = pneg %p29
      $region26: #{tpu_custom_call.1} parent=23 // pred_check_branch
        %130 = sbr.rel (%p128) target = $region28
      $region27: #{tpu_custom_call.1} parent=23 // pred_region
        %s131 = smul.u32 16, %s9
        %p132 = scmp.lt.s32.totalorder %s131, 31
        %s133 = scalar_select %p132, %s131, 31
        %s134 = smul.addr %s133, 8
        %s135 = scalar_lea.vmem %s0, %s134
        %s136 = smul.u32 16, %s9
      $region28: #{tpu_custom_call.1} parent=23 // pred_fallthru
        _
    $region24: #{tpu_custom_call.1} parent=5 // pred_fallthru
      _
    %p137 = scmp.le.s32.totalorder 1, %s9
    %p138 = scmp.lt.s32.totalorder %s9, 3
    %p139 = pnand %p137, %p138
    %p140 = pneg %p139
    // Predicated region
    $region29: #{tpu_custom_call.1} parent=5 // pred_check
      _
    $region30: #{tpu_custom_call.1} parent=5 // pred_check_branch
      %142 = sbr.rel (%p139) target = $region32
    $region31: #{tpu_custom_call.1} parent=5 // pred_region
      %s143 = ssub.s32 %s9, 1
      %s144 = smul.u32 16, %s14
      %p145 = scmp.lt.s32.totalorder %s144, 31
      %s146 = scalar_select %p145, %s144, 31
      %s147 = smul.addr %s146, 8
      %s148 = scalar_lea.vmem %s0, %s147
      %p149 = pneg %p35
      %p150 = pneg %p32
      %p151 = pneg %p56
      %p152 = pneg %p53
      %p153 = pneg %p77
      %p154 = pneg %p74
      %p155 = pneg %p103
      %p156 = pneg %p100
      %s157 = smul.u32 16, %s14
      %p158 = scmp.lt.s32.totalorder %s157, 31
      %s159 = scalar_select %p158, %s157, 31
      %s160 = smul.addr %s159, 4
      %s161 = scalar_lea.vmem %s3, %s160
      %s162 = smul.u32 16, %s14
      %p163 = scmp.lt.s32.totalorder %s162, 31
      %s164 = scalar_select %p163, %s162, 31
      %s165 = smul.addr %s164, 8
      %s166 = scalar_lea.vmem %s0, %s165
      %s167 = smul.u32 16, %s14
      %s168 = smul.u32 16, %s14
      %p169 = scmp.lt.s32.totalorder %s168, 31
      %s170 = scalar_select %p169, %s168, 31
      %s171 = smul.addr %s170, 4
      %s172 = scalar_lea.vmem %s3, %s171
      %s173 = smul.u32 16, %s14
      %v174 = vld [vmem:[%s166] sm:$0xff]
      %v175 = vld [vmem:[%s166 + $0x8] sm:$0xff]
      %v176 = vld [vmem:[%s166 + $0x10] sm:$0xff]
      %v177 = vld [vmem:[%s166 + $0x18] sm:$0xff]
      %v178 = vld [vmem:[%s166 + $0x20] sm:$0xff]
      %v179 = vld [vmem:[%s166 + $0x28] sm:$0xff]
      %v180 = vld [vmem:[%s166 + $0x30] sm:$0xff]
      %v181 = vld [vmem:[%s166 + $0x38] sm:$0xff]
      %v182 = vld [vmem:[%s166 + $0x40] sm:$0xff]
      %v183 = vld [vmem:[%s166 + $0x48] sm:$0xff]
      %v184 = vld [vmem:[%s166 + $0x50] sm:$0xff]
      %v185 = vld [vmem:[%s166 + $0x58] sm:$0xff]
      %v186 = vld [vmem:[%s166 + $0x60] sm:$0xff]
      %v187 = vld [vmem:[%s166 + $0x68] sm:$0xff]
      %v188 = vld [vmem:[%s166 + $0x70] sm:$0xff]
      %v189 = vld [vmem:[%s166 + $0x78] sm:$0xff]
      %v190 = vld [vmem:[%s1] sm:$0xff]
      %v191 = vld [vmem:[%s2] sm:$0x1]
      %v193 = vlaneseq
      %v194 = vshrl.u32 %v193, 7
      %v195 = vsub.s32 0, %v194
      %v196 = vrot.slane %v191, %v195
      %vm198 = vcmask 64512
      %v200 = vsel %vm198, %v174, 0
      %v203 = vsel %vm198, %v175, 0
      %v206 = vsel %vm198, %v176, 0
      %v209 = vsel %vm198, %v177, 0
      %v212 = vsel %vm198, %v178, 0
      %v215 = vsel %vm198, %v179, 0
      %v218 = vsel %vm198, %v180, 0
      %v221 = vsel %vm198, %v181, 0
      %v224 = vsel %vm198, %v182, 0
      %v227 = vsel %vm198, %v183, 0
      %v230 = vsel %vm198, %v184, 0
      %v233 = vsel %vm198, %v185, 0
      %v236 = vsel %vm198, %v186, 0
      %v239 = vsel %vm198, %v187, 0
      %v242 = vsel %vm198, %v188, 0
      %v245 = vsel %vm198, %v189, 0
      %247 = vmatprep.subr.mxu0 0.0
      %248 = vmatpush1.msra.mxu0 %v190
      %249 = vmatprep.subr.mxu0 0.0
      %250 = vmatpush1.msra.mxu0 0.0
      %251 = vmatprep.subr.mxu0 0.0
      %252 = vmatpush1.msra.mxu0 0.0
      %253 = vmatprep.subr.mxu0 0.0
      %254 = vmatpush1.msra.mxu0 0.0
      %255 = vmatprep.subr.mxu0 0.0
      %256 = vmatpush1.msra.mxu0 0.0
      %257 = vmatprep.subr.mxu0 0.0
      %258 = vmatpush1.msra.mxu0 0.0
      %259 = vmatprep.subr.mxu0 0.0
      %260 = vmatpush1.msra.mxu0 0.0
      %261 = vmatprep.subr.mxu0 0.0
      %262 = vmatpush1.msra.mxu0 0.0
      %263 = vmatprep.subr.mxu0 0.0
      %264 = vmatpush1.msra.mxu0 0.0
      %265 = vmatprep.subr.mxu0 0.0
      %266 = vmatpush1.msra.mxu0 0.0
      %267 = vmatprep.subr.mxu0 0.0
      %268 = vmatpush1.msra.mxu0 0.0
      %269 = vmatprep.subr.mxu0 0.0
      %270 = vmatpush1.msra.mxu0 0.0
      %271 = vmatprep.subr.mxu0 0.0
      %272 = vmatpush1.msra.mxu0 0.0
      %273 = vmatprep.subr.mxu0 0.0
      %274 = vmatpush1.msra.mxu0 0.0
      %275 = vmatprep.subr.mxu0 0.0
      %276 = vmatpush1.msra.mxu0 0.0
      %277 = vmatprep.subr.mxu0 0.0
      %278 = vmatpush1.msra.mxu0 0.0
      %279 = vmatprep.subr.mxu0 0.0
      %280 = vmatpush1.msra.mxu0 0.0
      %281 = vmatprep.subr.mxu0 0.0
      %282 = vmatpush1.msra.mxu0 0.0
      %283 = vmatprep.subr.mxu0 0.0
      %284 = vmatpush1.msra.mxu0 0.0
      %285 = vmatprep.subr.mxu0 0.0
      %286 = vmatpush1.msra.mxu0 0.0
      %287 = vmatprep.subr.mxu0 0.0
      %288 = vmatpush1.msra.mxu0 0.0
      %289 = vmatprep.subr.mxu0 0.0
      %290 = vmatpush1.msra.mxu0 0.0
      %291 = vmatprep.subr.mxu0 0.0
      %292 = vmatpush1.msra.mxu0 0.0
      %293 = vmatprep.subr.mxu0 0.0
      %294 = vmatpush1.msra.mxu0 0.0
      %295 = vmatprep.subr.mxu0 0.0
      %296 = vmatpush1.msra.mxu0 0.0
      %297 = vmatprep.subr.mxu0 0.0
      %298 = vmatpush1.msra.mxu0 0.0
      %299 = vmatprep.subr.mxu0 0.0
      %300 = vmatpush1.msra.mxu0 0.0
      %301 = vmatprep.subr.mxu0 0.0
      %302 = vmatpush1.msra.mxu0 0.0
      %303 = vmatprep.subr.mxu0 0.0
      %304 = vmatpush1.msra.mxu0 0.0
      %305 = vmatprep.subr.mxu0 0.0
      %306 = vmatpush1.msra.mxu0 0.0
      %307 = vmatprep.subr.mxu0 0.0
      %308 = vmatpush1.msra.mxu0 0.0
      %309 = vmatprep.subr.mxu0 0.0
      %310 = vmatpush1.msra.mxu0 0.0
      %311 = vmatprep.mubr.f32.mxu0 0.0
      %312 = vmatmul.mubr.f32.gmra.mrb[0].mxu0 %v200
      %v313 = vpop.f32.mrb[0].mxu0
      %v314 = vadd.f32 %v196, %v313
      %v315 = vpop.f32.mrb[0].mxu0
      %316 = vmatprep.mubr.f32.mxu0 0.0
      %317 = vmatmul.mubr.f32.gmra.mrb[0].mxu0 %v203
      %v318 = vpop.f32.mrb[0].mxu0
      %v319 = vadd.f32 %v196, %v318
      %v320 = vpop.f32.mrb[0].mxu0
      %321 = vmatprep.mubr.f32.mxu0 0.0
      %322 = vmatmul.mubr.f32.gmra.mrb[0].mxu0 %v206
      %v323 = vpop.f32.mrb[0].mxu0
      %v324 = vadd.f32 %v196, %v323
      %v325 = vpop.f32.mrb[0].mxu0
      %326 = vmatprep.mubr.f32.mxu0 0.0
      %327 = vmatmul.mubr.f32.gmra.mrb[0].mxu0 %v209
      %v328 = vpop.f32.mrb[0].mxu0
      %v329 = vadd.f32 %v196, %v328
      %v330 = vpop.f32.mrb[0].mxu0
      %331 = vmatprep.mubr.f32.mxu0 0.0
      %332 = vmatmul.mubr.f32.gmra.mrb[0].mxu0 %v212
      %v333 = vpop.f32.mrb[0].mxu0
      %v334 = vadd.f32 %v196, %v333
      %v335 = vpop.f32.mrb[0].mxu0
      %336 = vmatprep.mubr.f32.mxu0 0.0
      %337 = vmatmul.mubr.f32.gmra.mrb[0].mxu0 %v215
      %v338 = vpop.f32.mrb[0].mxu0
      %v339 = vadd.f32 %v196, %v338
      %v340 = vpop.f32.mrb[0].mxu0
      %341 = vmatprep.mubr.f32.mxu0 0.0
      %342 = vmatmul.mubr.f32.gmra.mrb[0].mxu0 %v218
      %v343 = vpop.f32.mrb[0].mxu0
      %v344 = vadd.f32 %v196, %v343
      %v345 = vpop.f32.mrb[0].mxu0
      %346 = vmatprep.mubr.f32.mxu0 0.0
      %347 = vmatmul.mubr.f32.gmra.mrb[0].mxu0 %v221
      %v348 = vpop.f32.mrb[0].mxu0
      %v349 = vadd.f32 %v196, %v348
      %v350 = vpop.f32.mrb[0].mxu0
      %351 = vmatprep.mubr.f32.mxu0 0.0
      %352 = vmatmul.mubr.f32.gmra.mrb[0].mxu0 %v224
      %v353 = vpop.f32.mrb[0].mxu0
      %v354 = vadd.f32 %v196, %v353
      %v355 = vpop.f32.mrb[0].mxu0
      %356 = vmatprep.mubr.f32.mxu0 0.0
      %357 = vmatmul.mubr.f32.gmra.mrb[0].mxu0 %v227
      %v358 = vpop.f32.mrb[0].mxu0
      %v359 = vadd.f32 %v196, %v358
      %v360 = vpop.f32.mrb[0].mxu0
      %361 = vmatprep.mubr.f32.mxu0 0.0
      %362 = vmatmul.mubr.f32.gmra.mrb[0].mxu0 %v230
      %v363 = vpop.f32.mrb[0].mxu0
      %v364 = vadd.f32 %v196, %v363
      %v365 = vpop.f32.mrb[0].mxu0
      %366 = vmatprep.mubr.f32.mxu0 0.0
      %367 = vmatmul.mubr.f32.gmra.mrb[0].mxu0 %v233
      %v368 = vpop.f32.mrb[0].mxu0
      %v369 = vadd.f32 %v196, %v368
      %v370 = vpop.f32.mrb[0].mxu0
      %371 = vmatprep.mubr.f32.mxu0 0.0
      %372 = vmatmul.mubr.f32.gmra.mrb[0].mxu0 %v236
      %v373 = vpop.f32.mrb[0].mxu0
      %v374 = vadd.f32 %v196, %v373
      %v375 = vpop.f32.mrb[0].mxu0
      %376 = vmatprep.mubr.f32.mxu0 0.0
      %377 = vmatmul.mubr.f32.gmra.mrb[0].mxu0 %v239
      %v378 = vpop.f32.mrb[0].mxu0
      %v379 = vadd.f32 %v196, %v378
      %v380 = vpop.f32.mrb[0].mxu0
      %381 = vmatprep.mubr.f32.mxu0 0.0
      %382 = vmatmul.mubr.f32.gmra.mrb[0].mxu0 %v242
      %v383 = vpop.f32.mrb[0].mxu0
      %v384 = vadd.f32 %v196, %v383
      %v385 = vpop.f32.mrb[0].mxu0
      %386 = vmatprep.mubr.f32.mxu0 0.0
      %387 = vmatmul.mubr.f32.gmra.mrb[0].mxu0 %v245
      %v388 = vpop.f32.mrb[0].mxu0
      %v389 = vadd.f32 %v196, %v388
      %v390 = vpop.f32.mrb[0].mxu0
      %391 = vdwg.mxu0
      %v392 = vmax.f32 %v314, 0.0
      %v393 = vmax.f32 %v319, 0.0
      %v394 = vmax.f32 %v324, 0.0
      %v395 = vmax.f32 %v329, 0.0
      %v396 = vmax.f32 %v334, 0.0
      %v397 = vmax.f32 %v339, 0.0
      %v398 = vmax.f32 %v344, 0.0
      %v399 = vmax.f32 %v349, 0.0
      %v400 = vmax.f32 %v354, 0.0
      %v401 = vmax.f32 %v359, 0.0
      %v402 = vmax.f32 %v364, 0.0
      %v403 = vmax.f32 %v369, 0.0
      %v404 = vmax.f32 %v374, 0.0
      %v405 = vmax.f32 %v379, 0.0
      %v406 = vmax.f32 %v384, 0.0
      %v407 = vmax.f32 %v389, 0.0
      %v408 = vpack.c.bf16 %v393, %v392
      %v409 = vpack.c.bf16 %v395, %v394
      %v410 = vpack.c.bf16 %v397, %v396
      %v411 = vpack.c.bf16 %v399, %v398
      %v412 = vpack.c.bf16 %v401, %v400
      %v413 = vpack.c.bf16 %v403, %v402
      %v414 = vpack.c.bf16 %v405, %v404
      %v415 = vpack.c.bf16 %v407, %v406
      %v424 = vunpack.c.l.b16 %v408
      %v425 = vunpack.c.h.b16 %v408
      %v426 = vunpack.c.l.b16 %v409
      %v427 = vunpack.c.h.b16 %v409
      %v428 = vunpack.c.l.b16 %v410
      %v429 = vunpack.c.h.b16 %v410
      %v430 = vunpack.c.l.b16 %v411
      %v431 = vunpack.c.h.b16 %v411
      %v432 = vunpack.c.l.b16 %v412
      %v433 = vunpack.c.h.b16 %v412
      %v434 = vunpack.c.l.b16 %v413
      %v435 = vunpack.c.h.b16 %v413
      %v436 = vunpack.c.l.b16 %v414
      %v437 = vunpack.c.h.b16 %v414
      %v438 = vunpack.c.l.b16 %v415
      %v439 = vunpack.c.h.b16 %v415
      %v440 = vpack.c.b16 %v424, %v424
      %v441 = vpack.c.b16 %v425, %v425
      %v442 = vpack.c.b16 %v426, %v426
      %v443 = vpack.c.b16 %v427, %v427
      %v444 = vpack.c.b16 %v428, %v428
      %v445 = vpack.c.b16 %v429, %v429
      %v446 = vpack.c.b16 %v430, %v430
      %v447 = vpack.c.b16 %v431, %v431
      %v448 = vpack.c.b16 %v432, %v432
      %v449 = vpack.c.b16 %v433, %v433
      %v450 = vpack.c.b16 %v434, %v434
      %v451 = vpack.c.b16 %v435, %v435
      %v452 = vpack.c.b16 %v436, %v436
      %v453 = vpack.c.b16 %v437, %v437
      %v454 = vpack.c.b16 %v438, %v438
      %v455 = vpack.c.b16 %v439, %v439
      %vm472 = vcmask 257024
      %473 = vst.msk [vmem:[%s172] sm:$0xf] %vm472, %v440
      %474 = vst.msk [vmem:[%s172 + $0x4] sm:$0xf] %vm472, %v441
      %475 = vst.msk [vmem:[%s172 + $0x8] sm:$0xf] %vm472, %v442
      %476 = vst.msk [vmem:[%s172 + $0xc] sm:$0xf] %vm472, %v443
      %477 = vst.msk [vmem:[%s172 + $0x10] sm:$0xf] %vm472, %v444
      %478 = vst.msk [vmem:[%s172 + $0x14] sm:$0xf] %vm472, %v445
      %479 = vst.msk [vmem:[%s172 + $0x18] sm:$0xf] %vm472, %v446
      %480 = vst.msk [vmem:[%s172 + $0x1c] sm:$0xf] %vm472, %v447
      %481 = vst.msk [vmem:[%s172 + $0x20] sm:$0xf] %vm472, %v448
      %482 = vst.msk [vmem:[%s172 + $0x24] sm:$0xf] %vm472, %v449
      %483 = vst.msk [vmem:[%s172 + $0x28] sm:$0xf] %vm472, %v450
      %484 = vst.msk [vmem:[%s172 + $0x2c] sm:$0xf] %vm472, %v451
      %485 = vst.msk [vmem:[%s172 + $0x30] sm:$0xf] %vm472, %v452
      %486 = vst.msk [vmem:[%s172 + $0x34] sm:$0xf] %vm472, %v453
      %487 = vst.msk [vmem:[%s172 + $0x38] sm:$0xf] %vm472, %v454
      %488 = vst.msk [vmem:[%s172 + $0x3c] sm:$0xf] %vm472, %v455
      %s489 = smul.u32 16, %s14
      %p490 = scmp.lt.s32.totalorder %s489, 31
      %s491 = scalar_select %p490, %s489, 31
      %s492 = smul.addr %s491, 4
      %s493 = scalar_lea.vmem %s3, %s492
      // Predicated region
      $region33: #{tpu_custom_call.1} parent=31 // pred_check
        %p494 = pneg %p100
      $region34: #{tpu_custom_call.1} parent=31 // pred_check_branch
        %496 = sbr.rel (%p494) target = $region36
      $region35: #{tpu_custom_call.1} parent=31 // pred_region
        %s497 = smul.u32 16, %s14
      $region36: #{tpu_custom_call.1} parent=31 // pred_fallthru
        _
    $region32: #{tpu_custom_call.1} parent=5 // pred_fallthru
      _
    %p498 = scmp.le.s32.totalorder 2, %s9
    // Predicated region
    $region37: #{tpu_custom_call.1} parent=5 // pred_check
      %p499 = pneg %p498
    $region38: #{tpu_custom_call.1} parent=5 // pred_check_branch
      %501 = sbr.rel (%p499) target = $region40
    $region39: #{tpu_custom_call.1} parent=5 // pred_region
      %s502 = ssub.s32 %s9, 2
      // Predicated region
      $region41: #{tpu_custom_call.1} parent=39 // pred_check
        %p503 = pneg %p106
      $region42: #{tpu_custom_call.1} parent=39 // pred_check_branch
        %505 = sbr.rel (%p503) target = $region44
      $region43: #{tpu_custom_call.1} parent=39 // pred_region
        %s506 = smul.u32 16, %s15
        %p507 = scmp.lt.s32.totalorder %s506, 31
        %s508 = scalar_select %p507, %s506, 31
        %s509 = smul.addr %s508, 4
        %s510 = scalar_lea.vmem %s3, %s509
      $region44: #{tpu_custom_call.1} parent=39 // pred_fallthru
        _
    $region40: #{tpu_custom_call.1} parent=5 // pred_fallthru
      _
  $region6: #{tpu_custom_call.1} parent=0 // loop_footer
    %s13 = sadd.s32 1, %s9
  $region7: #{tpu_custom_call.1} parent=0 // loop_footer_branch
    %8 = sbr.rel target = $region3
  $region8: #{tpu_custom_call.1} parent=0 // loop_exit
    _

</llo_original>
